<compile_context>
chip_gen: v6e
topology: v6e:2x2x1
jax: 0.10.0
libtpu: 0.0.40
codegen_flags: <defaults>
</compile_context>

<pallas_src>
import jax
import jax.numpy as jnp
from jax.experimental import pallas as pl
from jax.experimental.pallas import tpu as pltpu


def _sigmoid(x):
    # exp on the EUP, approximate reciprocal on the EUP (frees the VPU divide
    # and shortens the serial per-layer dependence chain).
    return pl.reciprocal(1.0 + jnp.exp(-x), approx=True)


def mlp_kernel(x_ref, w1_ref, b1_ref, w2_ref, b2_ref, w3_ref, b3_ref, o_ref):
    # Feature-major: x_ref is (F, TB) with batch lane-dense on the 128 lanes.
    x = x_ref[...]                                                  # (10, TB)

    # layer 1: (30,10) @ (10,TB) + (30,1)  -> sigmoid
    h1 = _sigmoid(
        jnp.dot(w1_ref[...], x, preferred_element_type=jnp.float32)
        + b1_ref[...])                                              # (30, TB)

    # layer 2: (30,30) @ (30,TB) + (30,1)  -> sigmoid
    h2 = _sigmoid(
        jnp.dot(w2_ref[...], h1, preferred_element_type=jnp.float32)
        + b2_ref[...])                                              # (30, TB)

    # layer 3: (1,30) @ (30,TB) + (1,1)    -> sigmoid (lane-dense output)
    o_ref[...] = _sigmoid(
        jnp.dot(w3_ref[...], h2, preferred_element_type=jnp.float32)
        + b3_ref[...])                                              # (1, TB)


def mlp_forward(x, params, *, tile_batch=4096):
    """x: (B, F) row-major like nn.Linear.  Returns (B, 1).

    tile_batch: batch tile in rows; ~4k is a good default on v5e/v6e (128 MiB
    VMEM); keep in the 2k-8k range on v7x (64 MiB VMEM, higher HBM BW).
    """
    w1, b1, w2, b2, w3, b3 = params            # PyTorch layout: (out, in), (out, 1)
    B, F = x.shape
    H1 = w1.shape[0]
    H2 = w2.shape[0]

    # Batch tile: a multiple of 128 so batch lives on the 128-lane axis.
    TB = max(128, (min(tile_batch, B + 127) // 128) * 128)
    num_tiles = pl.cdiv(B, TB)
    B_pad = num_tiles * TB

    # Feature-major input, zero-padded along batch to a multiple of TB.
    x_t = jnp.zeros((F, B_pad), jnp.float32).at[:, :B].set(x.T)

    flops = 2 * (F * H1 + H1 * H2 + H2 * 1) * B_pad
    transcendentals = (H1 + H2 + 1) * B_pad
    bytes_accessed = 4 * (
        (F + 1) * B_pad
        + w1.size + b1.size + w2.size + b2.size + w3.size + b3.size)

    out = pl.pallas_call(
        mlp_kernel,
        out_shape=jax.ShapeDtypeStruct((1, B_pad), jnp.float32),
        grid=(num_tiles,),
        in_specs=[
            pl.BlockSpec((F, TB), lambda i: (0, i)),     # x tile (batch-tiled)
            pl.BlockSpec((H1, F), lambda i: (0, 0)),     # W1 (resident, DMA elided)
            pl.BlockSpec((H1, 1), lambda i: (0, 0)),     # b1
            pl.BlockSpec((H2, H1), lambda i: (0, 0)),    # W2
            pl.BlockSpec((H2, 1), lambda i: (0, 0)),     # b2
            pl.BlockSpec((1, H2), lambda i: (0, 0)),     # W3
            pl.BlockSpec((1, 1), lambda i: (0, 0)),      # b3
        ],
        out_specs=pl.BlockSpec((1, TB), lambda i: (0, i)),
        compiler_params=pltpu.CompilerParams(
            dimension_semantics=("parallel",)),          # megacore split on v7x
        cost_estimate=pl.CostEstimate(
            flops=flops,
            transcendentals=transcendentals,
            bytes_accessed=bytes_accessed),
    )(x_t, w1, b1, w2, b2, w3, b3)

    # Strip batch padding and return the nn.Linear-style (B, 1) output.
    return out[:, :B].T


def init_params(key, n_input_features=10):
    """Deterministic params in PyTorch layout: W (out, in), b (out, 1)."""
    k1, k2, k3, k4, k5, k6 = jax.random.split(key, 6)
    w1 = jax.random.normal(k1, (30, n_input_features), jnp.float32) * 0.1
    b1 = jax.random.normal(k2, (30, 1), jnp.float32) * 0.1
    w2 = jax.random.normal(k3, (30, 30), jnp.float32) * 0.1
    b2 = jax.random.normal(k4, (30, 1), jnp.float32) * 0.1
    w3 = jax.random.normal(k5, (1, 30), jnp.float32) * 0.1
    b3 = jax.random.normal(k6, (1, 1), jnp.float32) * 0.1
    return (w1, b1, w2, b2, w3, b3)


def reference_forward(x, params):
    """Pure-JAX reference matching the PyTorch forward (y = x @ W.T + b)."""
    w1, b1, w2, b2, w3, b3 = params
    h = jax.nn.sigmoid(x @ w1.T + b1.T)
    h = jax.nn.sigmoid(h @ w2.T + b2.T)
    return jax.nn.sigmoid(h @ w3.T + b3.T)


if __name__ == "__main__":
    key = jax.random.PRNGKey(0)
    kx, kp = jax.random.split(key)

    batch, n_features = 200, 10                 # 200 pads to 256 -> 2 grid steps
    x = jax.random.normal(kx, (batch, n_features), jnp.float32)
    params = init_params(kp, n_features)

    y = mlp_forward(x, params, tile_batch=128)  # small tile to exercise the grid
    jax.block_until_ready(y)

    y_ref = reference_forward(x, params)
    assert y.shape == (batch, 1)
    # Loose-ish tolerance: the kernel uses the EUP approximate reciprocal
    # (approx=True) for the sigmoids; error is << 1e-2 but not bit-exact.
    assert jnp.allclose(y, y_ref, atol=1e-2, rtol=1e-2)

    print("KERNEL_OK")
</pallas_src>

<mosaic_0001>
module attributes {stable_mosaic.version = 11 : i64} {
  func.func @mlp_kernel(%arg0: i32, %arg1: memref<10x128xf32, #tpu.memory_space<vmem>>, %arg2: memref<30x10xf32, #tpu.memory_space<vmem>>, %arg3: memref<30x1xf32, #tpu.memory_space<vmem>>, %arg4: memref<30x30xf32, #tpu.memory_space<vmem>>, %arg5: memref<30x1xf32, #tpu.memory_space<vmem>>, %arg6: memref<1x30xf32, #tpu.memory_space<vmem>>, %arg7: memref<1x1xf32, #tpu.memory_space<vmem>>, %arg8: memref<1x128xf32, #tpu.memory_space<vmem>>) attributes {dimension_semantics = [#tpu.dimension_semantics<parallel>], iteration_bounds = array<i64: 2>, scalar_prefetch = 0 : i64, scratch_operands = 0 : i64, tpu.core_type = #tpu.core_type<tc>, window_params = [{transform_indices = @transform_0, window_bounds = array<i64: 10, 128>}, {pipeline_mode = #tpu.pipeline_mode<synchronous>, transform_indices = @transform_1, window_bounds = array<i64: 30, 10>}, {pipeline_mode = #tpu.pipeline_mode<synchronous>, transform_indices = @transform_2, window_bounds = array<i64: 30, 1>}, {pipeline_mode = #tpu.pipeline_mode<synchronous>, transform_indices = @transform_3, window_bounds = array<i64: 30, 30>}, {pipeline_mode = #tpu.pipeline_mode<synchronous>, transform_indices = @transform_4, window_bounds = array<i64: 30, 1>}, {pipeline_mode = #tpu.pipeline_mode<synchronous>, transform_indices = @transform_5, window_bounds = array<i64: 1, 30>}, {pipeline_mode = #tpu.pipeline_mode<synchronous>, transform_indices = @transform_6, window_bounds = array<i64: 1, 1>}, {transform_indices = @transform_7, window_bounds = array<i64: 1, 128>}]} {
    %c0 = arith.constant 0 : index
    %c0_0 = arith.constant 0 : index
    %0 = vector.load %arg1[%c0, %c0_0] : memref<10x128xf32, #tpu.memory_space<vmem>>, vector<10x128xf32>
    %c0_1 = arith.constant 0 : index
    %c0_2 = arith.constant 0 : index
    %1 = vector.load %arg2[%c0_1, %c0_2] : memref<30x10xf32, #tpu.memory_space<vmem>>, vector<30x10xf32>
    %cst = arith.constant dense<0.000000e+00> : vector<30x128xf32>
    %2 = tpu.matmul %1, %0, %cst {dimension_numbers = #tpu.dot_dimension_numbers<[1], [0], [0], [1], [0, 0, 1, 1], [], []>} : vector<30x10xf32>, vector<10x128xf32>, vector<30x128xf32> -> vector<30x128xf32>
    %c0_3 = arith.constant 0 : index
    %c0_4 = arith.constant 0 : index
    %3 = vector.load %arg3[%c0_3, %c0_4] : memref<30x1xf32, #tpu.memory_space<vmem>>, vector<30x1xf32>
    %4 = vector.broadcast %3 : vector<30x1xf32> to vector<30x128xf32>
    %5 = arith.addf %2, %4 : vector<30x128xf32>
    %cst_5 = arith.constant 0.000000e+00 : f32
    %6 = vector.broadcast %cst_5 : f32 to vector<30x128xf32>
    %7 = arith.subf %6, %5 : vector<30x128xf32>
    %8 = math.exp %7 : vector<30x128xf32>
    %cst_6 = arith.constant 1.000000e+00 : f32
    %9 = vector.broadcast %cst_6 : f32 to vector<30x128xf32>
    %10 = arith.addf %9, %8 : vector<30x128xf32>
    %11 = tpu.reciprocal %10 {approx = true} : vector<30x128xf32> -> vector<30x128xf32>
    %c0_7 = arith.constant 0 : index
    %c0_8 = arith.constant 0 : index
    %12 = vector.load %arg4[%c0_7, %c0_8] : memref<30x30xf32, #tpu.memory_space<vmem>>, vector<30x30xf32>
    %cst_9 = arith.constant dense<0.000000e+00> : vector<30x128xf32>
    %13 = tpu.matmul %12, %11, %cst_9 {dimension_numbers = #tpu.dot_dimension_numbers<[1], [0], [0], [1], [0, 0, 1, 1], [], []>} : vector<30x30xf32>, vector<30x128xf32>, vector<30x128xf32> -> vector<30x128xf32>
    %c0_10 = arith.constant 0 : index
    %c0_11 = arith.constant 0 : index
    %14 = vector.load %arg5[%c0_10, %c0_11] : memref<30x1xf32, #tpu.memory_space<vmem>>, vector<30x1xf32>
    %15 = vector.broadcast %14 : vector<30x1xf32> to vector<30x128xf32>
    %16 = arith.addf %13, %15 : vector<30x128xf32>
    %cst_12 = arith.constant 0.000000e+00 : f32
    %17 = vector.broadcast %cst_12 : f32 to vector<30x128xf32>
    %18 = arith.subf %17, %16 : vector<30x128xf32>
    %19 = math.exp %18 : vector<30x128xf32>
    %cst_13 = arith.constant 1.000000e+00 : f32
    %20 = vector.broadcast %cst_13 : f32 to vector<30x128xf32>
    %21 = arith.addf %20, %19 : vector<30x128xf32>
    %22 = tpu.reciprocal %21 {approx = true} : vector<30x128xf32> -> vector<30x128xf32>
    %c0_14 = arith.constant 0 : index
    %c0_15 = arith.constant 0 : index
    %23 = vector.load %arg6[%c0_14, %c0_15] : memref<1x30xf32, #tpu.memory_space<vmem>>, vector<1x30xf32>
    %cst_16 = arith.constant dense<0.000000e+00> : vector<1x128xf32>
    %24 = tpu.matmul %23, %22, %cst_16 {dimension_numbers = #tpu.dot_dimension_numbers<[1], [0], [0], [1], [0, 0, 1, 1], [], []>} : vector<1x30xf32>, vector<30x128xf32>, vector<1x128xf32> -> vector<1x128xf32>
    %c0_17 = arith.constant 0 : index
    %c0_18 = arith.constant 0 : index
    %25 = vector.load %arg7[%c0_17, %c0_18] : memref<1x1xf32, #tpu.memory_space<vmem>>, vector<1x1xf32>
    %26 = vector.broadcast %25 : vector<1x1xf32> to vector<1x128xf32>
    %27 = arith.addf %24, %26 : vector<1x128xf32>
    %cst_19 = arith.constant 0.000000e+00 : f32
    %28 = vector.broadcast %cst_19 : f32 to vector<1x128xf32>
    %29 = arith.subf %28, %27 : vector<1x128xf32>
    %30 = math.exp %29 : vector<1x128xf32>
    %cst_20 = arith.constant 1.000000e+00 : f32
    %31 = vector.broadcast %cst_20 : f32 to vector<1x128xf32>
    %32 = arith.addf %31, %30 : vector<1x128xf32>
    %33 = tpu.reciprocal %32 {approx = true} : vector<1x128xf32> -> vector<1x128xf32>
    %c0_21 = arith.constant 0 : index
    %c0_22 = arith.constant 0 : index
    %34 = vector.load %arg8[%c0_21, %c0_22] : memref<1x128xf32, #tpu.memory_space<vmem>>, vector<1x128xf32>
    tpu.vector_store %arg8[%c0_21, %c0_22], %33 {strides = array<i32>} : memref<1x128xf32, #tpu.memory_space<vmem>>, vector<1x128xf32>,
    return
  }
  func.func @transform_0(%arg0: i32) -> (i32, i32) {
    %c0_i32 = arith.constant 0 : i32
    %c0_i32_0 = arith.constant 0 : i32
    return %c0_i32, %arg0 : i32, i32
  }
  func.func @transform_1(%arg0: i32) -> (i32, i32) {
    %c0_i32 = arith.constant 0 : i32
    %c0_i32_0 = arith.constant 0 : i32
    %c0_i32_1 = arith.constant 0 : i32
    return %c0_i32, %c0_i32_0 : i32, i32
  }
  func.func @transform_2(%arg0: i32) -> (i32, i32) {
    %c0_i32 = arith.constant 0 : i32
    %c0_i32_0 = arith.constant 0 : i32
    %c0_i32_1 = arith.constant 0 : i32
    return %c0_i32, %c0_i32_0 : i32, i32
  }
  func.func @transform_3(%arg0: i32) -> (i32, i32) {
    %c0_i32 = arith.constant 0 : i32
    %c0_i32_0 = arith.constant 0 : i32
    %c0_i32_1 = arith.constant 0 : i32
    return %c0_i32, %c0_i32_0 : i32, i32
  }
  func.func @transform_4(%arg0: i32) -> (i32, i32) {
    %c0_i32 = arith.constant 0 : i32
    %c0_i32_0 = arith.constant 0 : i32
    %c0_i32_1 = arith.constant 0 : i32
    return %c0_i32, %c0_i32_0 : i32, i32
  }
  func.func @transform_5(%arg0: i32) -> (i32, i32) {
    %c0_i32 = arith.constant 0 : i32
    %c0_i32_0 = arith.constant 0 : i32
    %c0_i32_1 = arith.constant 0 : i32
    return %c0_i32, %c0_i32_0 : i32, i32
  }
  func.func @transform_6(%arg0: i32) -> (i32, i32) {
    %c0_i32 = arith.constant 0 : i32
    %c0_i32_0 = arith.constant 0 : i32
    %c0_i32_1 = arith.constant 0 : i32
    return %c0_i32, %c0_i32_0 : i32, i32
  }
  func.func @transform_7(%arg0: i32) -> (i32, i32) {
    %c0_i32 = arith.constant 0 : i32
    %c0_i32_0 = arith.constant 0 : i32
    return %c0_i32, %arg0 : i32, i32
  }
}

</mosaic_0001>

<llo_original>
// kernel: tpu_custom_call.1
$region0: #{tpu_custom_call.1}
  #allocation0 [shape = 'u32[]', space=smem, size = 0x4, offset = 0x4, fixed_abs, tag = 'smem constant byte address 0x4 - core index']
  #allocation1 [shape = 'u32[144,128]{1,0:T(1,128)}', space=vmem, size = 0x12000, scoped, tag = 'internal scratch']
  #allocation2 [shape = 'f32[1,1]{1,0:T(1,128)S(1)}', space=vmem, size = 0x200, scoped, tag = 'scoped memory for tpu_custom_call.1']
  %s0 = inlined_call_operand.vmem [shape: f32[10,256], index: 0, kind: input, shape index: {}]
  %s1 = inlined_call_operand.vmem [shape: f32[30,10], index: 1, kind: input, shape index: {}]
  %s2 = inlined_call_operand.vmem [shape: f32[30,1], index: 2, kind: input, shape index: {}]
  %s3 = inlined_call_operand.vmem [shape: f32[30,30], index: 3, kind: input, shape index: {}]
  %s4 = inlined_call_operand.vmem [shape: f32[30,1], index: 4, kind: input, shape index: {}]
  %s5 = inlined_call_operand.vmem [shape: f32[1,30], index: 5, kind: input, shape index: {}]
  %s6 = inlined_call_operand.<no memory space> [shape: f32[1,1], index: 6, kind: input, shape index: {}]
  %s7 = inlined_call_operand.hbm [shape: f32[1,256], index: 7, kind: output, shape index: {}]
  %s8 = sld [smem:[#allocation0]]
  $region99: #{tpu_custom_call.1} parent=0
    _
  %s10 = ssub.s32 1, %s8
  %s11 = scalar_select 0, %s10, %s8
  %v12 = vstv %s6
  %13 = vst [vmem:[#allocation2] sm:$0x1] %v12
  $region1: #{tpu_custom_call.1} parent=0
    #allocation3 [shape = 'u8[16384]{0}', space=vmem, size = 0x4000, scoped, tag = 'input window, operand 0']
    #allocation4 [shape = 'u8[1024]{0}', space=vmem, size = 0x400, scoped, tag = 'output window, operand 0']
    #allocation5 [shape = 's32[2]{0}', space=sflag, size = 0x8, scoped, tag = 'scoped memory for tpu_custom_call.1']
    %14 = vsyncpa [#allocation5], 0
    %s15 = scalar_lea.sflag [#allocation5], 1
    %16 = vsyncpa %s15, 0
    loop: start=0, step=1, limit=4
    $region2: #{tpu_custom_call.1} parent=1 // loop_pre_header
      _
    $region3: #{tpu_custom_call.1} parent=1 // loop_header
      %s18 = sphi 0, %s22
      %p19 = scmp.ge.s32.totalorder %s18, 4
      %s28 = sphi 0, %s30
      %s31 = sphi 0, %s28
      %s32 = sphi 0, %s31
      %s48 = sphi 0, %s32
      %s52 = sphi 0, %s52
      %s54 = sphi 0, %s52
      %s55 = sphi 0, %s54
      %s69 = sphi 0, %s55
      %s73 = sphi 0, %s73
      %s75 = sphi 0, %s73
      %s76 = sphi 0, %s75
      %s90 = sphi 0, %s76
      %s94 = sphi 0, %s94
      %s96 = sphi 0, %s94
      %s97 = sphi 0, %s96
      %s111 = sphi 0, %s97
      %s115 = sphi 0, %s115
      %s117 = sphi 0, %s115
      %s118 = sphi 0, %s117
      %s132 = sphi 0, %s118
      %s136 = sphi 0, %s136
      %s138 = sphi 0, %s136
      %s139 = sphi 0, %s138
      %s153 = sphi 0, %s139
      %s157 = sphi 0, %s157
      %s159 = sphi 0, %s157
      %s160 = sphi 0, %s159
      %s174 = sphi 0, %s160
      %s180 = sphi 0, %s182
      %s183 = sphi 0, %s180
      %s184 = sphi 0, %s183
      %s200 = sphi 0, %s184
    $region4: #{tpu_custom_call.1} parent=1 // loop_header_branch
      %21 = sbr.rel (%p19) target = $region8
    $region5: #{tpu_custom_call.1} parent=1 // loop_body
      %s23 = ssub.s32 %s18, 1
      %s24 = ssub.s32 %s18, 2
      %s25 = sadd.s32 %s18, 1
      %s26 = ssub.s32 %s18, %s25
      %p27 = scmp.eq.s32.totalorder %s26, 0
      %s29 = sadd.s32 %s28, 1
      %s30 = scalar_select %p27, %s28, %s29
      %p33 = pneg %p27
      %p34 = scmp.eq.s32.totalorder %s18, 1
      %p35 = por %p33, %p34
      %p36 = scmp.ne.s32.totalorder %s28, %s31
      %p37 = scmp.eq.s32.totalorder %s18, 0
      %p38 = por %p36, %p37
      %p39 = scmp.ne.s32.totalorder %s28, %s31
      %p40 = scmp.eq.s32.totalorder %s23, 1
      %p41 = por %p39, %p40
      %p42 = scmp.ne.s32.totalorder %s31, %s32
      %p43 = scmp.eq.s32.totalorder %s23, 0
      %p44 = por %p42, %p43
      %p45 = scmp.ne.s32.totalorder %s31, %s32
      %p46 = scmp.eq.s32.totalorder %s24, 1
      %p47 = por %p45, %p46
      %p49 = scmp.ne.s32.totalorder %s32, %s48
      %p50 = scmp.eq.s32.totalorder %s24, 0
      %p51 = por %p49, %p50
      %s53 = sadd.s32 %s52, 1
      %p56 = scmp.eq.s32.totalorder %s18, 1
      %p57 = scmp.ne.s32.totalorder %s52, %s54
      %p58 = scmp.eq.s32.totalorder %s18, 0
      %p59 = por %p57, %p58
      %p60 = scmp.ne.s32.totalorder %s52, %s54
      %p61 = scmp.eq.s32.totalorder %s23, 1
      %p62 = por %p60, %p61
      %p63 = scmp.ne.s32.totalorder %s54, %s55
      %p64 = scmp.eq.s32.totalorder %s23, 0
      %p65 = por %p63, %p64
      %p66 = scmp.ne.s32.totalorder %s54, %s55
      %p67 = scmp.eq.s32.totalorder %s24, 1
      %p68 = por %p66, %p67
      %p70 = scmp.ne.s32.totalorder %s55, %s69
      %p71 = scmp.eq.s32.totalorder %s24, 0
      %p72 = por %p70, %p71
      %s74 = sadd.s32 %s73, 1
      %p77 = scmp.eq.s32.totalorder %s18, 1
      %p78 = scmp.ne.s32.totalorder %s73, %s75
      %p79 = scmp.eq.s32.totalorder %s18, 0
      %p80 = por %p78, %p79
      %p81 = scmp.ne.s32.totalorder %s73, %s75
      %p82 = scmp.eq.s32.totalorder %s23, 1
      %p83 = por %p81, %p82
      %p84 = scmp.ne.s32.totalorder %s75, %s76
      %p85 = scmp.eq.s32.totalorder %s23, 0
      %p86 = por %p84, %p85
      %p87 = scmp.ne.s32.totalorder %s75, %s76
      %p88 = scmp.eq.s32.totalorder %s24, 1
      %p89 = por %p87, %p88
      %p91 = scmp.ne.s32.totalorder %s76, %s90
      %p92 = scmp.eq.s32.totalorder %s24, 0
      %p93 = por %p91, %p92
      %s95 = sadd.s32 %s94, 1
      %p98 = scmp.eq.s32.totalorder %s18, 1
      %p99 = scmp.ne.s32.totalorder %s94, %s96
      %p100 = scmp.eq.s32.totalorder %s18, 0
      %p101 = por %p99, %p100
      %p102 = scmp.ne.s32.totalorder %s94, %s96
      %p103 = scmp.eq.s32.totalorder %s23, 1
      %p104 = por %p102, %p103
      %p105 = scmp.ne.s32.totalorder %s96, %s97
      %p106 = scmp.eq.s32.totalorder %s23, 0
      %p107 = por %p105, %p106
      %p108 = scmp.ne.s32.totalorder %s96, %s97
      %p109 = scmp.eq.s32.totalorder %s24, 1
      %p110 = por %p108, %p109
      %p112 = scmp.ne.s32.totalorder %s97, %s111
      %p113 = scmp.eq.s32.totalorder %s24, 0
      %p114 = por %p112, %p113
      %s116 = sadd.s32 %s115, 1
      %p119 = scmp.eq.s32.totalorder %s18, 1
      %p120 = scmp.ne.s32.totalorder %s115, %s117
      %p121 = scmp.eq.s32.totalorder %s18, 0
      %p122 = por %p120, %p121
      %p123 = scmp.ne.s32.totalorder %s115, %s117
      %p124 = scmp.eq.s32.totalorder %s23, 1
      %p125 = por %p123, %p124
      %p126 = scmp.ne.s32.totalorder %s117, %s118
      %p127 = scmp.eq.s32.totalorder %s23, 0
      %p128 = por %p126, %p127
      %p129 = scmp.ne.s32.totalorder %s117, %s118
      %p130 = scmp.eq.s32.totalorder %s24, 1
      %p131 = por %p129, %p130
      %p133 = scmp.ne.s32.totalorder %s118, %s132
      %p134 = scmp.eq.s32.totalorder %s24, 0
      %p135 = por %p133, %p134
      %s137 = sadd.s32 %s136, 1
      %p140 = scmp.eq.s32.totalorder %s18, 1
      %p141 = scmp.ne.s32.totalorder %s136, %s138
      %p142 = scmp.eq.s32.totalorder %s18, 0
      %p143 = por %p141, %p142
      %p144 = scmp.ne.s32.totalorder %s136, %s138
      %p145 = scmp.eq.s32.totalorder %s23, 1
      %p146 = por %p144, %p145
      %p147 = scmp.ne.s32.totalorder %s138, %s139
      %p148 = scmp.eq.s32.totalorder %s23, 0
      %p149 = por %p147, %p148
      %p150 = scmp.ne.s32.totalorder %s138, %s139
      %p151 = scmp.eq.s32.totalorder %s24, 1
      %p152 = por %p150, %p151
      %p154 = scmp.ne.s32.totalorder %s139, %s153
      %p155 = scmp.eq.s32.totalorder %s24, 0
      %p156 = por %p154, %p155
      %s158 = sadd.s32 %s157, 1
      %p161 = scmp.eq.s32.totalorder %s18, 1
      %p162 = scmp.ne.s32.totalorder %s157, %s159
      %p163 = scmp.eq.s32.totalorder %s18, 0
      %p164 = por %p162, %p163
      %p165 = scmp.ne.s32.totalorder %s157, %s159
      %p166 = scmp.eq.s32.totalorder %s23, 1
      %p167 = por %p165, %p166
      %p168 = scmp.ne.s32.totalorder %s159, %s160
      %p169 = scmp.eq.s32.totalorder %s23, 0
      %p170 = por %p168, %p169
      %p171 = scmp.ne.s32.totalorder %s159, %s160
      %p172 = scmp.eq.s32.totalorder %s24, 1
      %p173 = por %p171, %p172
      %p175 = scmp.ne.s32.totalorder %s160, %s174
      %p176 = scmp.eq.s32.totalorder %s24, 0
      %p177 = por %p175, %p176
      %s178 = ssub.s32 %s18, %s25
      %p179 = scmp.eq.s32.totalorder %s178, 0
      %s181 = sadd.s32 %s180, 1
      %s182 = scalar_select %p179, %s180, %s181
      %p185 = pneg %p179
      %p186 = scmp.eq.s32.totalorder %s18, 1
      %p187 = por %p185, %p186
      %p188 = scmp.ne.s32.totalorder %s180, %s183
      %p189 = scmp.eq.s32.totalorder %s18, 0
      %p190 = por %p188, %p189
      %p191 = scmp.ne.s32.totalorder %s180, %s183
      %p192 = scmp.eq.s32.totalorder %s23, 1
      %p193 = por %p191, %p192
      %p194 = scmp.ne.s32.totalorder %s183, %s184
      %p195 = scmp.eq.s32.totalorder %s23, 0
      %p196 = por %p194, %p195
      %p197 = scmp.ne.s32.totalorder %s183, %s184
      %p198 = scmp.eq.s32.totalorder %s24, 1
      %p199 = por %p197, %p198
      %p201 = scmp.ne.s32.totalorder %s184, %s200
      %p202 = scmp.eq.s32.totalorder %s24, 0
      %p203 = por %p201, %p202
      %p204 = scmp.le.s32.totalorder 1, %s18
      %p205 = scmp.lt.s32.totalorder %s18, 3
      %p206 = pnand %p204, %p205
      %p207 = pneg %p206
      // Predicated region
      $region9: #{tpu_custom_call.1} parent=5 // pred_check
        _
      $region10: #{tpu_custom_call.1} parent=5 // pred_check_branch
        %209 = sbr.rel (%p206) target = $region12
      $region11: #{tpu_custom_call.1} parent=5 // pred_region
        %s210 = ssub.s32 %s18, 1
        // Predicated region
        $region13: #{tpu_custom_call.1} parent=11 // pred_check
          %p211 = pneg %p65
        $region14: #{tpu_custom_call.1} parent=11 // pred_check_branch
          %213 = sbr.rel (%p211) target = $region16
        $region15: #{tpu_custom_call.1} parent=11 // pred_region
          _
        $region16: #{tpu_custom_call.1} parent=11 // pred_fallthru
          _
        // Predicated region
        $region17: #{tpu_custom_call.1} parent=11 // pred_check
          %p214 = pneg %p86
        $region18: #{tpu_custom_call.1} parent=11 // pred_check_branch
          %216 = sbr.rel (%p214) target = $region20
        $region19: #{tpu_custom_call.1} parent=11 // pred_region
          _
        $region20: #{tpu_custom_call.1} parent=11 // pred_fallthru
          _
        // Predicated region
        $region21: #{tpu_custom_call.1} parent=11 // pred_check
          %p217 = pneg %p107
        $region22: #{tpu_custom_call.1} parent=11 // pred_check_branch
          %219 = sbr.rel (%p217) target = $region24
        $region23: #{tpu_custom_call.1} parent=11 // pred_region
          _
        $region24: #{tpu_custom_call.1} parent=11 // pred_fallthru
          _
        // Predicated region
        $region25: #{tpu_custom_call.1} parent=11 // pred_check
          %p220 = pneg %p128
        $region26: #{tpu_custom_call.1} parent=11 // pred_check_branch
          %222 = sbr.rel (%p220) target = $region28
        $region27: #{tpu_custom_call.1} parent=11 // pred_region
          _
        $region28: #{tpu_custom_call.1} parent=11 // pred_fallthru
          _
        // Predicated region
        $region29: #{tpu_custom_call.1} parent=11 // pred_check
          %p223 = pneg %p149
        $region30: #{tpu_custom_call.1} parent=11 // pred_check_branch
          %225 = sbr.rel (%p223) target = $region32
        $region31: #{tpu_custom_call.1} parent=11 // pred_region
          _
        $region32: #{tpu_custom_call.1} parent=11 // pred_fallthru
          _
        // Predicated region
        $region33: #{tpu_custom_call.1} parent=11 // pred_check
          %p226 = pneg %p170
        $region34: #{tpu_custom_call.1} parent=11 // pred_check_branch
          %228 = sbr.rel (%p226) target = $region36
        $region35: #{tpu_custom_call.1} parent=11 // pred_region
          _
        $region36: #{tpu_custom_call.1} parent=11 // pred_fallthru
          _
      $region12: #{tpu_custom_call.1} parent=5 // pred_fallthru
        _
      %p229 = scmp.lt.s32.totalorder %s18, 2
      // Predicated region
      $region37: #{tpu_custom_call.1} parent=5 // pred_check
        %p230 = pneg %p229
      $region38: #{tpu_custom_call.1} parent=5 // pred_check_branch
        %232 = sbr.rel (%p230) target = $region40
      $region39: #{tpu_custom_call.1} parent=5 // pred_region
        // Predicated region
        $region41: #{tpu_custom_call.1} parent=39 // pred_check
          %p233 = pneg %p38
        $region42: #{tpu_custom_call.1} parent=39 // pred_check_branch
          %235 = sbr.rel (%p233) target = $region44
        $region43: #{tpu_custom_call.1} parent=39 // pred_region
          %s236 = sand.u32 %s28, 1
          %s237 = sand.u32 %s28, 1
          %s238 = smul.addr %s237, 16
          %s239 = scalar_lea.vmem [#allocation3], %s238
          %s240 = smul.addr %s18, 8
          %s241 = scalar_lea.vmem %s0, %s240
          // Predicated region
          $region45: #{tpu_custom_call.1} parent=43 // pred_check
            _
          $region46: #{tpu_custom_call.1} parent=43 // pred_check_branch
            %243 = sbr.rel (0) target = $region48
          $region47: #{tpu_custom_call.1} parent=43 // pred_region
            // Predicated region
            $region49: #{tpu_custom_call.1} parent=47 // pred_check
              _
            $region50: #{tpu_custom_call.1} parent=47 // pred_check_branch
              %245 = sbr.rel (0) target = $region52
            $region51: #{tpu_custom_call.1} parent=47 // pred_region
              // Predicated region
              $region64: #{tpu_custom_call.1} parent=51 // pred_check
                _
              $region65: #{tpu_custom_call.1} parent=51 // pred_check_branch
                %263 = sbr.rel (0) target = $region67
              $region66: #{tpu_custom_call.1} parent=51 // pred_region
                loop: start=0, step=1, limit=1
                $region68: #{tpu_custom_call.1} parent=66 // loop_pre_header
                  _
                $region69: #{tpu_custom_call.1} parent=66 // loop_header
                  %s265 = sphi 0, %s269
                  %p266 = scmp.ge.s32.totalorder %s265, 1
                  %s270 = sphi %s241, %s241
                  %s271 = sphi %s239, %s239
                $region70: #{tpu_custom_call.1} parent=66 // loop_header_branch
                  %268 = sbr.rel (%p266) target = $region74
                $region71: #{tpu_custom_call.1} parent=66 // loop_body
                  %v272 = vld [vmem:[%s270] sm:$0xff]
                  %273 = vst [vmem:[%s271] sm:$0xff] %v272
                  %v274 = vld [vmem:[%s270 + $0x10] sm:$0xff]
                  %275 = vst [vmem:[%s271 + $0x8] sm:$0xff] %v274
                $region72: #{tpu_custom_call.1} parent=66 // loop_footer
                  %s269 = sadd.s32 1, %s265
                $region73: #{tpu_custom_call.1} parent=66 // loop_footer_branch
                  %264 = sbr.rel target = $region69
                $region74: #{tpu_custom_call.1} parent=66 // loop_exit
                  _
              $region67: #{tpu_custom_call.1} parent=51 // pred_fallthru
                _
              // Predicated region
              $region75: #{tpu_custom_call.1} parent=51 // pred_check
                _
              $region76: #{tpu_custom_call.1} parent=51 // pred_check_branch
                %277 = sbr.rel target = $region78
              $region77: #{tpu_custom_call.1} parent=51 // pred_region
                _
              $region78: #{tpu_custom_call.1} parent=51 // pred_fallthru
                _
            $region52: #{tpu_custom_call.1} parent=47 // pred_fallthru
              _
            // Predicated region
            $region53: #{tpu_custom_call.1} parent=47 // pred_check
              _
            $region54: #{tpu_custom_call.1} parent=47 // pred_check_branch
              %247 = sbr.rel target = $region56
            $region55: #{tpu_custom_call.1} parent=47 // pred_region
              %s249 = ssub.s32 256, 1
              loop: start=0, step=1, limit=1
              $region57: #{tpu_custom_call.1} parent=55 // loop_pre_header
                _
              $region58: #{tpu_custom_call.1} parent=55 // loop_header
                %s251 = sphi 0, %s255
                %p252 = scmp.ge.s32.totalorder %s251, 1
                %s256 = sphi %s241, %s241
                %s257 = sphi %s239, %s239
              $region59: #{tpu_custom_call.1} parent=55 // loop_header_branch
                %254 = sbr.rel (%p252) target = $region63
              $region60: #{tpu_custom_call.1} parent=55 // loop_body
                %v258 = vld [vmem:[%s256] sm:%s249]
                %259 = vst [vmem:[%s257] sm:%s249] %v258
                %v260 = vld [vmem:[%s256 + $0x10] sm:%s249]
                %261 = vst [vmem:[%s257 + $0x8] sm:%s249] %v260
              $region61: #{tpu_custom_call.1} parent=55 // loop_footer
                %s255 = sadd.s32 1, %s251
              $region62: #{tpu_custom_call.1} parent=55 // loop_footer_branch
                %250 = sbr.rel target = $region58
              $region63: #{tpu_custom_call.1} parent=55 // loop_exit
                _
            $region56: #{tpu_custom_call.1} parent=47 // pred_fallthru
              _
          $region48: #{tpu_custom_call.1} parent=43 // pred_fallthru
            _
          %278 = vnop
        $region44: #{tpu_custom_call.1} parent=39 // pred_fallthru
          _
      $region40: #{tpu_custom_call.1} parent=5 // pred_fallthru
        _
      %p279 = scmp.le.s32.totalorder 1, %s18
      %p280 = scmp.lt.s32.totalorder %s18, 3
      %p281 = pnand %p279, %p280
      %p282 = pneg %p281
      // Predicated region
      $region79: #{tpu_custom_call.1} parent=5 // pred_check
        _
      $region80: #{tpu_custom_call.1} parent=5 // pred_check_branch
        %284 = sbr.rel (%p281) target = $region82
      $region81: #{tpu_custom_call.1} parent=5 // pred_region
        %s285 = ssub.s32 %s18, 1
        %s286 = sand.u32 %s31, 1
        %s287 = sand.u32 %s31, 1
        %s288 = smul.addr %s287, 16
        %s289 = scalar_lea.vmem [#allocation3], %s288
        // Predicated region
        $region83: #{tpu_custom_call.1} parent=81 // pred_check
          %p290 = pneg %p44
        $region84: #{tpu_custom_call.1} parent=81 // pred_check_branch
          %292 = sbr.rel (%p290) target = $region86
        $region85: #{tpu_custom_call.1} parent=81 // pred_region
          _
        $region86: #{tpu_custom_call.1} parent=81 // pred_fallthru
          _
        %s293 = sand.u32 %s31, 1
        %s294 = sand.u32 %s31, 1
        %s295 = smul.addr %s294, 16
        %s296 = scalar_lea.vmem [#allocation3], %s295
        %p297 = pneg %p44
        %p298 = pneg %p41
        %p299 = pneg %p65
        %p300 = pneg %p62
        %p301 = pneg %p86
        %p302 = pneg %p83
        %p303 = pneg %p107
        %p304 = pneg %p104
        %p305 = pneg %p128
        %p306 = pneg %p125
        %p307 = pneg %p149
        %p308 = pneg %p146
        %p309 = pneg %p170
        %p310 = pneg %p167
        %p311 = pneg %p196
        %p312 = pneg %p193
        %s313 = sand.u32 %s183, 1
        %s314 = scalar_lea.sflag [#allocation5], %s313
        %s315 = sand.u32 %s183, 1
        %s316 = scalar_lea.vmem [#allocation4], %s315
        %v317 = vld [vmem:[%s289] sm:$0xff]
        %v318 = vld [vmem:[%s289 + $0x8] sm:$0x3]
        %v319 = vld [vmem:[%s1] sm:$0xff]
        %v320 = vld [vmem:[%s1 + $0x8] sm:$0xff]
        %v321 = vld [vmem:[%s1 + $0x10] sm:$0xff]
        %v322 = vld [vmem:[%s1 + $0x18] sm:$0x3f]
        %v323 = vld [vmem:[%s2] sm:$0xff]
        %v324 = vld [vmem:[%s2 + $0x8] sm:$0xff]
        %v325 = vld [vmem:[%s2 + $0x10] sm:$0xff]
        %v326 = vld [vmem:[%s2 + $0x18] sm:$0x3f]
        %328 = vset.pattern.permute.xlu0 0
        %329 = vperm.xlu0 %328, %v323
        %v330 = vpop.permute.xlu0 %329
        %333 = vset.pattern.permute.xlu0 0
        %334 = vperm.xlu0 %333, %v324
        %v335 = vpop.permute.xlu0 %334
        %338 = vset.pattern.permute.xlu0 0
        %339 = vperm.xlu0 %338, %v325
        %v340 = vpop.permute.xlu0 %339
        %343 = vset.pattern.permute.xlu0 0
        %344 = vperm.xlu0 %343, %v326
        %v345 = vpop.permute.xlu0 %344
        %vm347 = vcmask 80896
        %v349 = vsel %vm347, %v319, 0
        %v352 = vsel %vm347, %v320, 0
        %v355 = vsel %vm347, %v321, 0
        %v358 = vsel %vm347, %v322, 0
        %vm360 = vcmask 1041408
        %v362 = vsel %vm360, %v318, 0
        %364 = vmatprep.subr.mxu0 0.0
        %365 = vmatpush1.msra.mxu0 0.0
        %366 = vmatprep.subr.mxu0 0.0
        %367 = vmatpush1.msra.mxu0 0.0
        %368 = vmatprep.subr.mxu0 0.0
        %369 = vmatpush1.msra.mxu0 0.0
        %370 = vmatprep.subr.mxu0 0.0
        %371 = vmatpush1.msra.mxu0 0.0
        %372 = vmatprep.subr.mxu0 0.0
        %373 = vmatpush1.msra.mxu0 0.0
        %374 = vmatprep.subr.mxu0 0.0
        %375 = vmatpush1.msra.mxu0 0.0
        %376 = vmatprep.subr.mxu0 0.0
        %377 = vmatpush1.msra.mxu0 0.0
        %378 = vmatprep.subr.mxu0 0.0
        %379 = vmatpush1.msra.mxu0 0.0
        %380 = vmatprep.subr.mxu0 0.0
        %381 = vmatpush1.msra.mxu0 0.0
        %382 = vmatprep.subr.mxu0 0.0
        %383 = vmatpush1.msra.mxu0 0.0
        %384 = vmatprep.subr.mxu0 0.0
        %385 = vmatpush1.msra.mxu0 0.0
        %386 = vmatprep.subr.mxu0 0.0
        %387 = vmatpush1.msra.mxu0 0.0
        %388 = vmatprep.subr.mxu0 0.0
        %389 = vmatpush1.msra.mxu0 0.0
        %390 = vmatprep.subr.mxu0 0.0
        %391 = vmatpush1.msra.mxu0 0.0
        %392 = vmatprep.subr.mxu0 0.0
        %393 = vmatpush1.msra.mxu0 %v362
        %394 = vmatprep.subr.mxu0 0.0
        %395 = vmatpush1.msra.mxu0 %v317
        %396 = vmatprep.subr.mxu0 0.0
        %397 = vmatpush2.msra.mxu0 0.0
        %398 = vmatprep.subr.mxu0 0.0
        %399 = vmatpush2.msra.mxu0 0.0
        %400 = vmatprep.subr.mxu0 0.0
        %401 = vmatpush2.msra.mxu0 0.0
        %402 = vmatprep.subr.mxu0 0.0
        %403 = vmatpush2.msra.mxu0 0.0
        %404 = vmatprep.subr.mxu0 0.0
        %405 = vmatpush2.msra.mxu0 0.0
        %406 = vmatprep.subr.mxu0 0.0
        %407 = vmatpush2.msra.mxu0 0.0
        %408 = vmatprep.subr.mxu0 0.0
        %409 = vmatpush2.msra.mxu0 0.0
        %410 = vmatprep.subr.mxu0 0.0
        %411 = vmatpush2.msra.mxu0 0.0
        %412 = vmatprep.subr.mxu0 0.0
        %413 = vmatpush2.msra.mxu0 0.0
        %414 = vmatprep.subr.mxu0 0.0
        %415 = vmatpush2.msra.mxu0 0.0
        %416 = vmatprep.subr.mxu0 0.0
        %417 = vmatpush2.msra.mxu0 0.0
        %418 = vmatprep.subr.mxu0 0.0
        %419 = vmatpush2.msra.mxu0 0.0
        %420 = vmatprep.subr.mxu0 0.0
        %421 = vmatpush2.msra.mxu0 0.0
        %422 = vmatprep.subr.mxu0 0.0
        %423 = vmatpush2.msra.mxu0 0.0
        %424 = vmatprep.subr.mxu0 0.0
        %425 = vmatpush2.msra.mxu0 0.0
        %426 = vmatprep.subr.mxu0 0.0
        %427 = vmatpush2.msra.mxu0 0.0
        %428 = vmatprep.mubr.f32.mxu0 0.0
        %429 = vmatmul.mubr.f32.gmra.mxu0 %v349
        %v430 = vpop.f32.mrf.mxu0
        %v431 = vadd.f32 %v330, %v430
        %v432 = vpop.f32.mrf.mxu0
        %433 = vmatprep.mubr.f32.mxu0 0.0
        %434 = vmatmul.mubr.f32.gmra.mxu0 %v352
        %v435 = vpop.f32.mrf.mxu0
        %v436 = vadd.f32 %v335, %v435
        %v437 = vpop.f32.mrf.mxu0
        %438 = vmatprep.mubr.f32.mxu0 0.0
        %439 = vmatmul.mubr.f32.gmra.mxu0 %v355
        %v440 = vpop.f32.mrf.mxu0
        %v441 = vadd.f32 %v340, %v440
        %v442 = vpop.f32.mrf.mxu0
        %443 = vmatprep.mubr.f32.mxu0 0.0
        %444 = vmatmul.mubr.f32.gmra.mxu0 %v358
        %v445 = vpop.f32.mrf.mxu0
        %v446 = vadd.f32 %v345, %v445
        %v447 = vpop.f32.mrf.mxu0
        %448 = vdwg.mxu0
        %v449 = vsub.f32 0.0, %v431
        %v450 = vsub.f32 0.0, %v436
        %v451 = vsub.f32 0.0, %v441
        %v452 = vsub.f32 0.0, %v446
        %v453 = vmul.f32 %v449, 1.442695
        %v454 = vpow.pop %v453
        %v455 = vmul.f32 %v450, 1.442695
        %v456 = vpow.pop %v455
        %v457 = vmul.f32 %v451, 1.442695
        %v458 = vpow.pop %v457
        %v459 = vmul.f32 %v452, 1.442695
        %v460 = vpow.pop %v459
        %v461 = vadd.f32 %v454, 1.0
        %v462 = vadd.f32 %v456, 1.0
        %v463 = vadd.f32 %v458, 1.0
        %v464 = vadd.f32 %v460, 1.0
        %v465 = vrcp.pop %v461
        %v466 = vrcp.pop %v462
        %v467 = vrcp.pop %v463
        %v468 = vrcp.pop %v464
        %v469 = vld [vmem:[%s3] sm:$0xff]
        %v470 = vld [vmem:[%s3 + $0x8] sm:$0xff]
        %v471 = vld [vmem:[%s3 + $0x10] sm:$0xff]
        %v472 = vld [vmem:[%s3 + $0x18] sm:$0x3f]
        %v473 = vld [vmem:[%s4] sm:$0xff]
        %v474 = vld [vmem:[%s4 + $0x8] sm:$0xff]
        %v475 = vld [vmem:[%s4 + $0x10] sm:$0xff]
        %v476 = vld [vmem:[%s4 + $0x18] sm:$0x3f]
        %478 = vset.pattern.permute.xlu0 0
        %479 = vperm.xlu0 %478, %v473
        %v480 = vpop.permute.xlu0 %479
        %483 = vset.pattern.permute.xlu0 0
        %484 = vperm.xlu0 %483, %v474
        %v485 = vpop.permute.xlu0 %484
        %488 = vset.pattern.permute.xlu0 0
        %489 = vperm.xlu0 %488, %v475
        %v490 = vpop.permute.xlu0 %489
        %493 = vset.pattern.permute.xlu0 0
        %494 = vperm.xlu0 %493, %v476
        %v495 = vpop.permute.xlu0 %494
        %vm497 = vcmask 244736
        %v499 = vsel %vm497, %v469, 0
        %v502 = vsel %vm497, %v470, 0
        %v505 = vsel %vm497, %v471, 0
        %v508 = vsel %vm497, %v472, 0
        %vm510 = vcmask 1045504
        %v512 = vsel %vm510, %v468, 0
        %514 = vmatprep.subr.mxu0 0.0
        %515 = vmatpush1.msra.mxu0 0.0
        %516 = vmatprep.subr.mxu0 0.0
        %517 = vmatpush1.msra.mxu0 0.0
        %518 = vmatprep.subr.mxu0 0.0
        %519 = vmatpush1.msra.mxu0 0.0
        %520 = vmatprep.subr.mxu0 0.0
        %521 = vmatpush1.msra.mxu0 0.0
        %522 = vmatprep.subr.mxu0 0.0
        %523 = vmatpush1.msra.mxu0 0.0
        %524 = vmatprep.subr.mxu0 0.0
        %525 = vmatpush1.msra.mxu0 0.0
        %526 = vmatprep.subr.mxu0 0.0
        %527 = vmatpush1.msra.mxu0 0.0
        %528 = vmatprep.subr.mxu0 0.0
        %529 = vmatpush1.msra.mxu0 0.0
        %530 = vmatprep.subr.mxu0 0.0
        %531 = vmatpush1.msra.mxu0 0.0
        %532 = vmatprep.subr.mxu0 0.0
        %533 = vmatpush1.msra.mxu0 0.0
        %534 = vmatprep.subr.mxu0 0.0
        %535 = vmatpush1.msra.mxu0 0.0
        %536 = vmatprep.subr.mxu0 0.0
        %537 = vmatpush1.msra.mxu0 0.0
        %538 = vmatprep.subr.mxu0 0.0
        %539 = vmatpush1.msra.mxu0 %v512
        %540 = vmatprep.subr.mxu0 0.0
        %541 = vmatpush1.msra.mxu0 %v467
        %542 = vmatprep.subr.mxu0 0.0
        %543 = vmatpush1.msra.mxu0 %v466
        %544 = vmatprep.subr.mxu0 0.0
        %545 = vmatpush1.msra.mxu0 %v465
        %546 = vmatprep.subr.mxu0 0.0
        %547 = vmatpush2.msra.mxu0 0.0
        %548 = vmatprep.subr.mxu0 0.0
        %549 = vmatpush2.msra.mxu0 0.0
        %550 = vmatprep.subr.mxu0 0.0
        %551 = vmatpush2.msra.mxu0 0.0
        %552 = vmatprep.subr.mxu0 0.0
        %553 = vmatpush2.msra.mxu0 0.0
        %554 = vmatprep.subr.mxu0 0.0
        %555 = vmatpush2.msra.mxu0 0.0
        %556 = vmatprep.subr.mxu0 0.0
        %557 = vmatpush2.msra.mxu0 0.0
        %558 = vmatprep.subr.mxu0 0.0
        %559 = vmatpush2.msra.mxu0 0.0
        %560 = vmatprep.subr.mxu0 0.0
        %561 = vmatpush2.msra.mxu0 0.0
        %562 = vmatprep.subr.mxu0 0.0
        %563 = vmatpush2.msra.mxu0 0.0
        %564 = vmatprep.subr.mxu0 0.0
        %565 = vmatpush2.msra.mxu0 0.0
        %566 = vmatprep.subr.mxu0 0.0
        %567 = vmatpush2.msra.mxu0 0.0
        %568 = vmatprep.subr.mxu0 0.0
        %569 = vmatpush2.msra.mxu0 0.0
        %570 = vmatprep.subr.mxu0 0.0
        %571 = vmatpush2.msra.mxu0 0.0
        %572 = vmatprep.subr.mxu0 0.0
        %573 = vmatpush2.msra.mxu0 0.0
        %574 = vmatprep.subr.mxu0 0.0
        %575 = vmatpush2.msra.mxu0 0.0
        %576 = vmatprep.subr.mxu0 0.0
        %577 = vmatpush2.msra.mxu0 0.0
        %578 = vmatprep.mubr.f32.mxu0 0.0
        %579 = vmatmul.mubr.f32.gmra.mxu0 %v499
        %v580 = vpop.f32.mrf.mxu0
        %v581 = vadd.f32 %v480, %v580
        %v582 = vpop.f32.mrf.mxu0
        %583 = vmatprep.mubr.f32.mxu0 0.0
        %584 = vmatmul.mubr.f32.gmra.mxu0 %v502
        %v585 = vpop.f32.mrf.mxu0
        %v586 = vadd.f32 %v485, %v585
        %v587 = vpop.f32.mrf.mxu0
        %588 = vmatprep.mubr.f32.mxu0 0.0
        %589 = vmatmul.mubr.f32.gmra.mxu0 %v505
        %v590 = vpop.f32.mrf.mxu0
        %v591 = vadd.f32 %v490, %v590
        %v592 = vpop.f32.mrf.mxu0
        %593 = vmatprep.mubr.f32.mxu0 0.0
        %594 = vmatmul.mubr.f32.gmra.mxu0 %v508
        %v595 = vpop.f32.mrf.mxu0
        %v596 = vadd.f32 %v495, %v595
        %v597 = vpop.f32.mrf.mxu0
        %598 = vdwg.mxu0
        %v599 = vsub.f32 0.0, %v581
        %v600 = vsub.f32 0.0, %v586
        %v601 = vsub.f32 0.0, %v591
        %v602 = vsub.f32 0.0, %v596
        %v603 = vmul.f32 %v599, 1.442695
        %v604 = vpow.pop %v603
        %v605 = vmul.f32 %v600, 1.442695
        %v606 = vpow.pop %v605
        %v607 = vmul.f32 %v601, 1.442695
        %v608 = vpow.pop %v607
        %v609 = vmul.f32 %v602, 1.442695
        %v610 = vpow.pop %v609
        %v611 = vadd.f32 %v604, 1.0
        %v612 = vadd.f32 %v606, 1.0
        %v613 = vadd.f32 %v608, 1.0
        %v614 = vadd.f32 %v610, 1.0
        %v615 = vrcp.pop %v611
        %v616 = vrcp.pop %v612
        %v617 = vrcp.pop %v613
        %v618 = vrcp.pop %v614
        %v619 = vld [vmem:[%s5] sm:$0x1]
        %v620 = vld [vmem:[#allocation2] sm:$0x1]
        %622 = vset.pattern.permute.xlu0 0
        %623 = vperm.xlu0 %622, %v620
        %v624 = vpop.permute.xlu0 %623
        %v626 = vlaneseq
        %v627 = vshrl.u32 %v626, 7
        %v628 = vsub.s32 0, %v627
        %v629 = vrot.slane %v624, %v628
        %v631 = vsel %vm497, %v619, 0
        %v634 = vsel %vm510, %v618, 0
        %636 = vmatprep.subr.mxu0 0.0
        %637 = vmatpush1.msra.mxu0 0.0
        %638 = vmatprep.subr.mxu0 0.0
        %639 = vmatpush1.msra.mxu0 0.0
        %640 = vmatprep.subr.mxu0 0.0
        %641 = vmatpush1.msra.mxu0 0.0
        %642 = vmatprep.subr.mxu0 0.0
        %643 = vmatpush1.msra.mxu0 0.0
        %644 = vmatprep.subr.mxu0 0.0
        %645 = vmatpush1.msra.mxu0 0.0
        %646 = vmatprep.subr.mxu0 0.0
        %647 = vmatpush1.msra.mxu0 0.0
        %648 = vmatprep.subr.mxu0 0.0
        %649 = vmatpush1.msra.mxu0 0.0
        %650 = vmatprep.subr.mxu0 0.0
        %651 = vmatpush1.msra.mxu0 0.0
        %652 = vmatprep.subr.mxu0 0.0
        %653 = vmatpush1.msra.mxu0 0.0
        %654 = vmatprep.subr.mxu0 0.0
        %655 = vmatpush1.msra.mxu0 0.0
        %656 = vmatprep.subr.mxu0 0.0
        %657 = vmatpush1.msra.mxu0 0.0
        %658 = vmatprep.subr.mxu0 0.0
        %659 = vmatpush1.msra.mxu0 0.0
        %660 = vmatprep.subr.mxu0 0.0
        %661 = vmatpush1.msra.mxu0 %v634
        %662 = vmatprep.subr.mxu0 0.0
        %663 = vmatpush1.msra.mxu0 %v617
        %664 = vmatprep.subr.mxu0 0.0
        %665 = vmatpush1.msra.mxu0 %v616
        %666 = vmatprep.subr.mxu0 0.0
        %667 = vmatpush1.msra.mxu0 %v615
        %668 = vmatprep.subr.mxu0 0.0
        %669 = vmatpush2.msra.mxu0 0.0
        %670 = vmatprep.subr.mxu0 0.0
        %671 = vmatpush2.msra.mxu0 0.0
        %672 = vmatprep.subr.mxu0 0.0
        %673 = vmatpush2.msra.mxu0 0.0
        %674 = vmatprep.subr.mxu0 0.0
        %675 = vmatpush2.msra.mxu0 0.0
        %676 = vmatprep.subr.mxu0 0.0
        %677 = vmatpush2.msra.mxu0 0.0
        %678 = vmatprep.subr.mxu0 0.0
        %679 = vmatpush2.msra.mxu0 0.0
        %680 = vmatprep.subr.mxu0 0.0
        %681 = vmatpush2.msra.mxu0 0.0
        %682 = vmatprep.subr.mxu0 0.0
        %683 = vmatpush2.msra.mxu0 0.0
        %684 = vmatprep.subr.mxu0 0.0
        %685 = vmatpush2.msra.mxu0 0.0
        %686 = vmatprep.subr.mxu0 0.0
        %687 = vmatpush2.msra.mxu0 0.0
        %688 = vmatprep.subr.mxu0 0.0
        %689 = vmatpush2.msra.mxu0 0.0
        %690 = vmatprep.subr.mxu0 0.0
        %691 = vmatpush2.msra.mxu0 0.0
        %692 = vmatprep.subr.mxu0 0.0
        %693 = vmatpush2.msra.mxu0 0.0
        %694 = vmatprep.subr.mxu0 0.0
        %695 = vmatpush2.msra.mxu0 0.0
        %696 = vmatprep.subr.mxu0 0.0
        %697 = vmatpush2.msra.mxu0 0.0
        %698 = vmatprep.subr.mxu0 0.0
        %699 = vmatpush2.msra.mxu0 0.0
        %700 = vmatprep.mubr.f32.mxu0 0.0
        %701 = vmatmul.mubr.f32.gmra.mxu0 %v631
        %v702 = vpop.f32.mrf.mxu0
        %v703 = vadd.f32 %v629, %v702
        %v704 = vpop.f32.mrf.mxu0
        %705 = vdwg.mxu0
        %v706 = vsub.f32 0.0, %v703
        %v707 = vmul.f32 %v706, 1.442695
        %v708 = vpow.pop %v707
        %v709 = vadd.f32 %v708, 1.0
        %v710 = vrcp.pop %v709
        %711 = vst [vmem:[%s316] sm:$0x1] %v710
        %s712 = sand.u32 %s183, 1
        %s713 = scalar_lea.sflag [#allocation5], %s712
        %s714 = sand.u32 %s183, 1
        %s715 = scalar_lea.vmem [#allocation4], %s714
        // Predicated region
        $region87: #{tpu_custom_call.1} parent=81 // pred_check
          %p716 = pneg %p193
        $region88: #{tpu_custom_call.1} parent=81 // pred_check_branch
          %718 = sbr.rel (%p716) target = $region90
        $region89: #{tpu_custom_call.1} parent=81 // pred_region
          %s720 = ssub.s32 16, 16
          %721 = vsyncadd %s713, %s720
          %s722 = smul.addr %s23, 16
          %s723 = scalar_lea.hbm %s7, %s722
          %s725 = sshll.u32 %s715, 4
          %s726 = int_to_ptr.vmem [resolvable:$true] %s725
          %728 = dma.vmem_to_hbm [thread:$0]  %s726, 16, %s723, %s713
        $region90: #{tpu_custom_call.1} parent=81 // pred_fallthru
          _
      $region82: #{tpu_custom_call.1} parent=5 // pred_fallthru
        _
      %p729 = scmp.le.s32.totalorder 2, %s18
      // Predicated region
      $region91: #{tpu_custom_call.1} parent=5 // pred_check
        %p730 = pneg %p729
      $region92: #{tpu_custom_call.1} parent=5 // pred_check_branch
        %732 = sbr.rel (%p730) target = $region94
      $region93: #{tpu_custom_call.1} parent=5 // pred_region
        %s733 = ssub.s32 %s18, 2
        // Predicated region
        $region95: #{tpu_custom_call.1} parent=93 // pred_check
          %p734 = pneg %p199
        $region96: #{tpu_custom_call.1} parent=93 // pred_check_branch
          %736 = sbr.rel (%p734) target = $region98
        $region97: #{tpu_custom_call.1} parent=93 // pred_region
          %s737 = sand.u32 %s184, 1
          %s738 = scalar_lea.sflag [#allocation5], %s737
          %s739 = sand.u32 %s184, 1
          %s740 = scalar_lea.vmem [#allocation4], %s739
          %741 = dma.done %s738, 16
        $region98: #{tpu_custom_call.1} parent=93 // pred_fallthru
          _
      $region94: #{tpu_custom_call.1} parent=5 // pred_fallthru
        _
    $region6: #{tpu_custom_call.1} parent=1 // loop_footer
      %s22 = sadd.s32 1, %s18
    $region7: #{tpu_custom_call.1} parent=1 // loop_footer_branch
      %17 = sbr.rel target = $region3
    $region8: #{tpu_custom_call.1} parent=1 // loop_exit
      _
    %742 = vsyncpa [#allocation5], 1
    %s743 = scalar_lea.sflag [#allocation5], 1
    %744 = vsyncpa %s743, 1

</llo_original>
